<compile_context>
chip_gen: v7x
topology: tpu7x:2x2x1
jax: 0.10.0
libtpu: 0.0.40
codegen_flags: <defaults>
</compile_context>

<pallas_src>
import functools
import math

import jax
import jax.numpy as jnp
from jax import lax
from jax.experimental import pallas as pl
from jax.experimental.pallas import tpu as pltpu

_LANES = 128
_SUBLANES = 8


def _pow_static(t, gamma):
    """t ** gamma for a static Python float gamma, avoiding the exp/log pow path
    for integer and half-integer exponents (e.g. the default gamma=1.5)."""
    if gamma == round(gamma):                       # integer exponent
        n = int(round(gamma))
        out = jnp.ones_like(t)
        for _ in range(n):
            out = out * t
        return out
    if (2.0 * gamma) == round(2.0 * gamma):         # half-integer exponent
        n = int(round(gamma - 0.5))
        out = jnp.sqrt(t)
        for _ in range(n):
            out = out * t
        return out
    return t ** gamma                               # general fallback


def _focal_loss_kernel(pred_ref, true_ref, out_ref, acc_ref, *,
                       gamma, alpha, blocks_per_core, full_blocks, tail_rem):
    c = pl.program_id(0)                  # "parallel" axis (TensorCore split on v7x)
    i = pl.program_id(1)                  # "arbitrary" (reduction) axis
    g = c * blocks_per_core + i           # global block index (small, int32-safe)

    @pl.when(i == 0)
    def _():
        acc_ref[...] = jnp.zeros_like(acc_ref)

    x = pred_ref[...].astype(jnp.float32)   # logits
    z = true_ref[...].astype(jnp.float32)   # targets in [0, 1]

    # Shared transcendental: e = exp(-|x|) feeds both the BCE term and sigmoid.
    e = jnp.exp(-jnp.abs(x))
    one_plus_e = 1.0 + e

    # BCEWithLogitsLoss (reduction='none'), PyTorch's numerically stable form:
    #   loss = max(x, 0) - x*z + log1p(exp(-|x|))
    bce = jnp.maximum(x, 0.0) - x * z + jnp.log1p(e)

    # sigmoid(x) reusing e; approx EUP reciprocal + one Newton-Raphson refinement
    # (keeps the exact-divide VALU sequence off the critical slot).
    inv = pl.reciprocal(one_plus_e, approx=True)
    inv = inv * (2.0 - one_plus_e * inv)
    p = jnp.where(x >= 0.0, inv, e * inv)

    # t = 1 - p_t = 1 - (z*p + (1-z)*(1-p)) = p + z - 2*p*z
    t = p + z - 2.0 * p * z
    alpha_factor = (1.0 - alpha) + z * (2.0 * alpha - 1.0)
    loss = bce * alpha_factor * _pow_static(t, gamma)

    def _rowsum(v):
        # (block_rows, 128) -> (block_rows//8, 8, 128) is a layout no-op;
        # the axis-0 sum is pure VALU vreg adds into an (8, 128) tile.
        return jnp.sum(v.reshape(-1, _SUBLANES, _LANES), axis=0)

    # Fully valid blocks: accumulate unmasked (no iota / where per step).
    @pl.when(g < full_blocks)
    def _():
        acc_ref[...] += _rowsum(loss)

    # Only the single block containing the ragged tail pays for masking.
    # (Blocks with g > full_blocks are over-coverage duplicates and contribute 0.)
    if tail_rem > 0:
        @pl.when(g == full_blocks)
        def _():
            rows = lax.broadcasted_iota(jnp.int32, loss.shape, 0)
            lanes = lax.broadcasted_iota(jnp.int32, loss.shape, 1)
            local_flat = rows * _LANES + lanes          # block-local, no overflow
            acc_ref[...] += _rowsum(jnp.where(local_flat < tail_rem, loss, 0.0))

    @pl.when(i == pl.num_programs(1) - 1)
    def _():
        # Lane-dense, unmasked (8, 128) store per core; cross-lane reduce and the
        # mean divide happen once in the wrapper.
        out_ref[...] = acc_ref[...]


def focal_loss(pred, true, gamma=1.5, alpha=0.25, *,
               block_rows=2048, num_splits=1):
    """Focal loss with 'mean' reduction. pred/true: same-shape float arrays (NCHW).

    num_splits=1 for single-TensorCore parts (v5e/v6e); use num_splits=2 on v7x.
    """
    assert pred.shape == true.shape
    total = math.prod(pred.shape)
    rows = -(-total // _LANES)

    pred_flat = pred.reshape(-1)
    true_flat = true.reshape(-1)
    lane_pad = rows * _LANES - total
    if lane_pad:
        # Rare path: only when total isn't a multiple of 128; minimal flat pad.
        pred_flat = jnp.pad(pred_flat, (0, lane_pad))
        true_flat = jnp.pad(true_flat, (0, lane_pad))
    pred2d = pred_flat.reshape(rows, _LANES)   # free reshape when lane_pad == 0
    true2d = true_flat.reshape(rows, _LANES)

    # Block rows: multiple of 8, at most ~rows (rounded up), default 2048.
    block_rows_eff = min(int(block_rows), rows)
    block_rows_eff = max(_SUBLANES, -(-block_rows_eff // _SUBLANES) * _SUBLANES)
    block_elems = block_rows_eff * _LANES

    total_blocks = -(-rows // block_rows_eff)
    num_splits = max(1, min(int(num_splits), total_blocks))
    blocks_per_core = -(-total_blocks // num_splits)

    # Static tail bookkeeping: blocks [0, full_blocks) are fully valid; block
    # full_blocks (if any) has tail_rem valid elements; later blocks are padding.
    full_blocks = total // block_elems
    tail_rem = total - full_blocks * block_elems

    kernel = functools.partial(
        _focal_loss_kernel,
        gamma=float(gamma), alpha=float(alpha),
        blocks_per_core=blocks_per_core,
        full_blocks=full_blocks, tail_rem=tail_rem)

    def in_map(c, i):
        # Clamp so over-coverage steps (last core's overhang) never index a block
        # that starts past the array; those steps skip accumulation in the kernel.
        return (jnp.minimum(c * blocks_per_core + i, total_blocks - 1), 0)

    in_spec = pl.BlockSpec((block_rows_eff, _LANES), in_map)

    partials = pl.pallas_call(
        kernel,
        out_shape=jax.ShapeDtypeStruct((num_splits * _SUBLANES, _LANES), jnp.float32),
        grid_spec=pltpu.PrefetchScalarGridSpec(
            num_scalar_prefetch=0,
            grid=(num_splits, blocks_per_core),
            in_specs=[in_spec, in_spec],
            out_specs=pl.BlockSpec((_SUBLANES, _LANES), lambda c, i: (c, 0)),
            scratch_shapes=[pltpu.VMEM((_SUBLANES, _LANES), jnp.float32)],
        ),
        compiler_params=pltpu.CompilerParams(
            dimension_semantics=("parallel", "arbitrary"),
            vmem_limit_bytes=32 * 1024 * 1024),
    )(pred2d, true2d)

    # reduction='mean' (inherited from the wrapped BCEWithLogitsLoss).
    return jnp.sum(partials) / jnp.float32(total)


def _focal_loss_ref(pred, true, gamma=1.5, alpha=0.25):
    """Pure-JAX reference mirroring the PyTorch module."""
    x = pred.astype(jnp.float32)
    z = true.astype(jnp.float32)
    bce = jnp.maximum(x, 0.0) - x * z + jnp.log1p(jnp.exp(-jnp.abs(x)))
    p = jax.nn.sigmoid(x)
    p_t = z * p + (1 - z) * (1 - p)
    alpha_factor = z * alpha + (1 - z) * (1 - alpha)
    mod = (1.0 - p_t) ** gamma
    return jnp.mean(bce * alpha_factor * mod)


if __name__ == "__main__":
    key = jax.random.PRNGKey(0)
    k1, k2 = jax.random.split(key)
    # NCHW inputs, e.g. detection logits / targets.
    shape = (2, 4, 16, 16)
    pred = jax.random.normal(k1, shape, dtype=jnp.float32) * 2.0
    true = (jax.random.uniform(k2, shape) > 0.7).astype(jnp.float32)

    out = focal_loss(pred, true, gamma=1.5, alpha=0.25)
    out = jax.block_until_ready(out)

    ref = _focal_loss_ref(pred, true, gamma=1.5, alpha=0.25)
    assert jnp.allclose(out, ref, rtol=2e-5, atol=1e-7), (out, ref)
    print("KERNEL_OK")
</pallas_src>

<mosaic_0001>
module attributes {stable_mosaic.version = 11 : i64} {
  func.func @_focal_loss_kernel(%arg0: i32, %arg1: i32, %arg2: memref<16x128xf32, #tpu.memory_space<vmem>>, %arg3: memref<16x128xf32, #tpu.memory_space<vmem>>, %arg4: memref<8x128xf32, #tpu.memory_space<vmem>>, %arg5: memref<8x128xf32, #tpu.memory_space<vmem>>) attributes {dimension_semantics = [#tpu.dimension_semantics<parallel>, #tpu.dimension_semantics<arbitrary>], iteration_bounds = array<i64: 1, 1>, scalar_prefetch = 0 : i64, scratch_operands = 1 : i64, tpu.core_type = #tpu.core_type<tc>, window_params = [{transform_indices = @transform_0, window_bounds = array<i64: 16, 128>}, {transform_indices = @transform_1, window_bounds = array<i64: 16, 128>}, {transform_indices = @transform_2, window_bounds = array<i64: 8, 128>}]} {
    %c1_i32 = arith.constant 1 : i32
    %0 = arith.muli %arg0, %c1_i32 : i32
    %1 = arith.addi %0, %arg1 : i32
    %c0_i32 = arith.constant 0 : i32
    %2 = arith.cmpi eq, %arg1, %c0_i32 : i32
    %3 = arith.extui %2 : i1 to i32
    %c0_i32_0 = arith.constant 0 : i32
    %4 = arith.cmpi ne, %3, %c0_i32_0 : i32
    scf.if %4 {
      %cst_15 = arith.constant 0.000000e+00 : f32
      %47 = vector.broadcast %cst_15 : f32 to vector<8x128xf32>
      %c0_16 = arith.constant 0 : index
      %c0_17 = arith.constant 0 : index
      %48 = vector.load %arg5[%c0_16, %c0_17] : memref<8x128xf32, #tpu.memory_space<vmem>>, vector<8x128xf32>
      tpu.vector_store %arg5[%c0_16, %c0_17], %47 {strides = array<i32>} : memref<8x128xf32, #tpu.memory_space<vmem>>, vector<8x128xf32>,
    } else {
    }
    %c0 = arith.constant 0 : index
    %c0_1 = arith.constant 0 : index
    %5 = vector.load %arg2[%c0, %c0_1] : memref<16x128xf32, #tpu.memory_space<vmem>>, vector<16x128xf32>
    %c0_2 = arith.constant 0 : index
    %c0_3 = arith.constant 0 : index
    %6 = vector.load %arg3[%c0_2, %c0_3] : memref<16x128xf32, #tpu.memory_space<vmem>>, vector<16x128xf32>
    %7 = math.absf %5 : vector<16x128xf32>
    %cst = arith.constant 0.000000e+00 : f32
    %8 = vector.broadcast %cst : f32 to vector<16x128xf32>
    %9 = arith.subf %8, %7 : vector<16x128xf32>
    %10 = math.exp %9 : vector<16x128xf32>
    %cst_4 = arith.constant 1.000000e+00 : f32
    %11 = vector.broadcast %cst_4 : f32 to vector<16x128xf32>
    %12 = arith.addf %11, %10 : vector<16x128xf32>
    %cst_5 = arith.constant 0.000000e+00 : f32
    %13 = vector.broadcast %cst_5 : f32 to vector<16x128xf32>
    %14 = arith.maximumf %5, %13 : vector<16x128xf32>
    %15 = arith.mulf %5, %6 : vector<16x128xf32>
    %16 = arith.subf %14, %15 : vector<16x128xf32>
    %17 = math.log1p %10 : vector<16x128xf32>
    %18 = arith.addf %16, %17 : vector<16x128xf32>
    %19 = tpu.reciprocal %12 {approx = true} : vector<16x128xf32> -> vector<16x128xf32>
    %20 = arith.mulf %12, %19 : vector<16x128xf32>
    %cst_6 = arith.constant 2.000000e+00 : f32
    %21 = vector.broadcast %cst_6 : f32 to vector<16x128xf32>
    %22 = arith.subf %21, %20 : vector<16x128xf32>
    %23 = arith.mulf %19, %22 : vector<16x128xf32>
    %cst_7 = arith.constant 0.000000e+00 : f32
    %24 = vector.broadcast %cst_7 : f32 to vector<16x128xf32>
    %25 = arith.cmpf oge, %5, %24 : vector<16x128xf32>
    %26 = arith.mulf %10, %23 : vector<16x128xf32>
    %27 = arith.select %25, %23, %26 : vector<16x128xi1>, vector<16x128xf32>
    %28 = arith.addf %27, %6 : vector<16x128xf32>
    %cst_8 = arith.constant 2.000000e+00 : f32
    %29 = vector.broadcast %cst_8 : f32 to vector<16x128xf32>
    %30 = arith.mulf %29, %27 : vector<16x128xf32>
    %31 = arith.mulf %30, %6 : vector<16x128xf32>
    %32 = arith.subf %28, %31 : vector<16x128xf32>
    %cst_9 = arith.constant -5.000000e-01 : f32
    %33 = vector.broadcast %cst_9 : f32 to vector<16x128xf32>
    %34 = arith.mulf %6, %33 : vector<16x128xf32>
    %cst_10 = arith.constant 7.500000e-01 : f32
    %35 = vector.broadcast %cst_10 : f32 to vector<16x128xf32>
    %36 = arith.addf %35, %34 : vector<16x128xf32>
    %37 = arith.mulf %18, %36 : vector<16x128xf32>
    %38 = math.sqrt %32 : vector<16x128xf32>
    %39 = arith.mulf %38, %32 : vector<16x128xf32>
    %40 = arith.mulf %37, %39 : vector<16x128xf32>
    %c1_i32_11 = arith.constant 1 : i32
    %41 = arith.cmpi slt, %1, %c1_i32_11 : i32
    %42 = arith.extui %41 : i1 to i32
    %c0_i32_12 = arith.constant 0 : i32
    %43 = arith.cmpi ne, %42, %c0_i32_12 : i32
    scf.if %43 {
      %c0_15 = arith.constant 0 : index
      %c0_16 = arith.constant 0 : index
      %47 = vector.load %arg5[%c0_15, %c0_16] : memref<8x128xf32, #tpu.memory_space<vmem>>, vector<8x128xf32>
      %48 = vector.shape_cast %40 : vector<16x128xf32> to vector<2x8x128xf32>
      %cst_17 = arith.constant dense<0.000000e+00> : vector<8x128xf32>
      %49 = vector.multi_reduction <add>, %48, %cst_17 [0] : vector<2x8x128xf32> to vector<8x128xf32>
      %50 = arith.addf %47, %49 : vector<8x128xf32>
      %c0_18 = arith.constant 0 : index
      %c0_19 = arith.constant 0 : index
      %51 = vector.load %arg5[%c0_18, %c0_19] : memref<8x128xf32, #tpu.memory_space<vmem>>, vector<8x128xf32>
      tpu.vector_store %arg5[%c0_18, %c0_19], %50 {strides = array<i32>} : memref<8x128xf32, #tpu.memory_space<vmem>>, vector<8x128xf32>,
    } else {
    }
    %c0_i32_13 = arith.constant 0 : i32
    %44 = arith.cmpi eq, %arg1, %c0_i32_13 : i32
    %45 = arith.extui %44 : i1 to i32
    %c0_i32_14 = arith.constant 0 : i32
    %46 = arith.cmpi ne, %45, %c0_i32_14 : i32
    scf.if %46 {
      %c0_15 = arith.constant 0 : index
      %c0_16 = arith.constant 0 : index
      %47 = vector.load %arg5[%c0_15, %c0_16] : memref<8x128xf32, #tpu.memory_space<vmem>>, vector<8x128xf32>
      %c0_17 = arith.constant 0 : index
      %c0_18 = arith.constant 0 : index
      %48 = vector.load %arg4[%c0_17, %c0_18] : memref<8x128xf32, #tpu.memory_space<vmem>>, vector<8x128xf32>
      tpu.vector_store %arg4[%c0_17, %c0_18], %47 {strides = array<i32>} : memref<8x128xf32, #tpu.memory_space<vmem>>, vector<8x128xf32>,
    } else {
    }
    return
  }
  func.func @transform_0(%arg0: i32, %arg1: i32) -> (i32, i32) {
    %c1_i32 = arith.constant 1 : i32
    %0 = arith.muli %arg0, %c1_i32 : i32
    %1 = arith.addi %0, %arg1 : i32
    %c0_i32 = arith.constant 0 : i32
    %2 = arith.minsi %1, %c0_i32 : i32
    %c0_i32_0 = arith.constant 0 : i32
    %c0_i32_1 = arith.constant 0 : i32
    return %2, %c0_i32_0 : i32, i32
  }
  func.func @transform_1(%arg0: i32, %arg1: i32) -> (i32, i32) {
    %c1_i32 = arith.constant 1 : i32
    %0 = arith.muli %arg0, %c1_i32 : i32
    %1 = arith.addi %0, %arg1 : i32
    %c0_i32 = arith.constant 0 : i32
    %2 = arith.minsi %1, %c0_i32 : i32
    %c0_i32_0 = arith.constant 0 : i32
    %c0_i32_1 = arith.constant 0 : i32
    return %2, %c0_i32_0 : i32, i32
  }
  func.func @transform_2(%arg0: i32, %arg1: i32) -> (i32, i32) {
    %c0_i32 = arith.constant 0 : i32
    %c0_i32_0 = arith.constant 0 : i32
    return %arg0, %c0_i32 : i32, i32
  }
}

</mosaic_0001>

<llo_original>
// kernel: tpu_custom_call.1
$region0: #{tpu_custom_call.1}
  #allocation0 [shape = 'u32[]', space=smem, size = 0x4, offset = 0x4, fixed_abs, tag = 'smem constant byte address 0x4 - core index']
  #allocation1 [shape = 'u32[144,128]{1,0:T(1,128)}', space=vmem, size = 0x12000, scoped, tag = 'internal scratch']
  #allocation2 [shape = 'f32[8,128]{1,0:T(8,128)}', space=vmem, size = 0x1000, scoped, tag = 'scratch operand']
  %s0 = inlined_call_operand.hbm [shape: f32[16,128], index: 0, kind: input, shape index: {}]
  %s1 = inlined_call_operand.hbm [shape: f32[16,128], index: 1, kind: input, shape index: {}]
  %s2 = inlined_call_operand.hbm [shape: f32[8,128], index: 2, kind: output, shape index: {}]
  %s3 = sld [smem:[#allocation0]]
  $region38: #{tpu_custom_call.1} parent=0
    _
  %s5 = ssub.s32 1, %s3
  %s6 = scalar_select 0, %s5, %s3
  $region1: #{tpu_custom_call.1} parent=0
    #allocation3 [shape = 'u8[8192]{0}', space=vmem, size = 0x2000, scoped, tag = 'input window, operand 0, single buffered']
    #allocation4 [shape = 's32[1]{0}', space=sflag, size = 0x4, scoped, tag = 'scoped memory for tpu_custom_call.1']
    #allocation5 [shape = 's32[1]{0}', space=sflag, size = 0x4, scoped, tag = 'scoped memory for tpu_custom_call.1']
    #allocation6 [shape = 'u8[8192]{0}', space=vmem, size = 0x2000, scoped, tag = 'input window, operand 1, single buffered']
    #allocation7 [shape = 's32[1]{0}', space=sflag, size = 0x4, scoped, tag = 'scoped memory for tpu_custom_call.1']
    #allocation8 [shape = 'u8[4096]{0}', space=vmem, size = 0x1000, scoped, tag = 'output window, operand 0, single buffered']
    %7 = vsyncpa [#allocation4], 0
    %8 = vsyncpa [#allocation7], 0
    %9 = vsyncpa [#allocation5], 0
    // Predicated region
    $region2: #{tpu_custom_call.1} parent=1 // pred_check
      _
    $region3: #{tpu_custom_call.1} parent=1 // pred_check_branch
      %11 = sbr.rel (0) target = $region5
    $region4: #{tpu_custom_call.1} parent=1 // pred_region
      %s12 = sadd.s32 0, 0
      %p13 = scmp.lt.s32.totalorder %s12, 0
      %s14 = scalar_select %p13, %s12, 0
      %s15 = smul.u32 2, %s14
      %s17 = ssub.s32 256, 256
      %18 = vsyncadd [#allocation4], %s17
      %s19 = smul.addr %s15, 128
      %s20 = scalar_lea.hbm %s0, %s19
      %s21 = sshll.u32 [#allocation3], 4
      %s22 = int_to_ptr.vmem [resolvable:$true] %s21
      %27 = dma.hbm_to_vmem [thread:$0]  %s20, 256, %s22, [#allocation4], 128, 128, 8
    $region5: #{tpu_custom_call.1} parent=1 // pred_fallthru
      _
    // Predicated region
    $region6: #{tpu_custom_call.1} parent=1 // pred_check
      _
    $region7: #{tpu_custom_call.1} parent=1 // pred_check_branch
      %29 = sbr.rel (0) target = $region9
    $region8: #{tpu_custom_call.1} parent=1 // pred_region
      %s30 = sadd.s32 0, 0
      %p31 = scmp.lt.s32.totalorder %s30, 0
      %s32 = scalar_select %p31, %s30, 0
      %s33 = smul.u32 2, %s32
      %s35 = ssub.s32 256, 256
      %36 = vsyncadd [#allocation7], %s35
      %s37 = smul.addr %s33, 128
      %s38 = scalar_lea.hbm %s1, %s37
      %s39 = sshll.u32 [#allocation6], 4
      %s40 = int_to_ptr.vmem [resolvable:$true] %s39
      %45 = dma.hbm_to_vmem [thread:$0]  %s38, 256, %s40, [#allocation7], 128, 128, 8
    $region9: #{tpu_custom_call.1} parent=1 // pred_fallthru
      _
    // Predicated region
    $region10: #{tpu_custom_call.1} parent=1 // pred_check
      _
    $region11: #{tpu_custom_call.1} parent=1 // pred_check_branch
      %47 = sbr.rel (0) target = $region13
    $region12: #{tpu_custom_call.1} parent=1 // pred_region
      %48 = dma.done [#allocation4], 256
    $region13: #{tpu_custom_call.1} parent=1 // pred_fallthru
      _
    // Predicated region
    $region14: #{tpu_custom_call.1} parent=1 // pred_check
      _
    $region15: #{tpu_custom_call.1} parent=1 // pred_check_branch
      %50 = sbr.rel (0) target = $region17
    $region16: #{tpu_custom_call.1} parent=1 // pred_region
      %51 = dma.done [#allocation7], 256
    $region17: #{tpu_custom_call.1} parent=1 // pred_fallthru
      _
    %s52 = sadd.s32 0, 0
    %p53 = scmp.lt.s32.totalorder %s52, 0
    %s54 = scalar_select %p53, %s52, 0
    %s55 = smul.u32 2, %s54
    %s56 = sadd.s32 0, 0
    %p57 = scmp.lt.s32.totalorder %s56, 0
    %s58 = scalar_select %p57, %s56, 0
    %s59 = smul.u32 2, %s58
    %s60 = sadd.s32 0, 0
    %p61 = scmp.eq.s32.totalorder 0, 0
    // Predicated region
    $region18: #{tpu_custom_call.1} parent=1 // pred_check
      %p62 = pneg %p61
    $region19: #{tpu_custom_call.1} parent=1 // pred_check_branch
      %64 = sbr.rel (%p62) target = $region21
    $region20: #{tpu_custom_call.1} parent=1 // pred_region
      %65 = vst [vmem:[#allocation2] sm:$0xff] 0.0
    $region21: #{tpu_custom_call.1} parent=1 // pred_fallthru
      _
    %v66 = vld [vmem:[#allocation3] sm:$0xff]
    %v67 = vld [vmem:[#allocation3 + $0x8] sm:$0xff]
    %v68 = vld [vmem:[#allocation6] sm:$0xff]
    %v69 = vld [vmem:[#allocation6 + $0x8] sm:$0xff]
    %v70 = vand.u32 2147483647, %v66
    %v71 = vand.u32 2147483647, %v67
    %v72 = vsub.f32 0.0, %v70
    %v73 = vsub.f32 0.0, %v71
    %v74 = vmul.f32 %v72, 1.442695
    %v75 = vpow.pop %v74
    %v76 = vmul.f32 %v73, 1.442695
    %v77 = vpow.pop %v76
    %v78 = vadd.f32 %v75, 1.0
    %v79 = vadd.f32 %v77, 1.0
    %v80 = vmax.f32 %v66, 0.0
    %v81 = vmax.f32 %v67, 0.0
    %v82 = vmul.f32 %v66, %v68
    %v83 = vmul.f32 %v67, %v69
    %v84 = vsub.f32 %v80, %v82
    %v85 = vsub.f32 %v81, %v83
    %v86 = vadd.f32 %v75, 1.0
    %v87 = vlog2.pop %v86
    %v88 = vmul.f32 %v87, 0.6931472
    %v89 = vmul.f32 -0.5, %v75
    %v90 = vadd.f32 %v89, 1.0
    %v91 = vmul.f32 %v90, %v75
    %v92 = vand.u32 2147483647, %v75
    %vm93 = vcmp.lt.f32.partialorder %v92, 0.0004427343
    %v94 = vsel %vm93, %v91, %v88
    %v95 = vadd.f32 %v77, 1.0
    %v96 = vlog2.pop %v95
    %v97 = vmul.f32 %v96, 0.6931472
    %v98 = vmul.f32 -0.5, %v77
    %v99 = vadd.f32 %v98, 1.0
    %v100 = vmul.f32 %v99, %v77
    %v101 = vand.u32 2147483647, %v77
    %vm102 = vcmp.lt.f32.partialorder %v101, 0.0004427343
    %v103 = vsel %vm102, %v100, %v97
    %v104 = vadd.f32 %v84, %v94
    %v105 = vadd.f32 %v85, %v103
    %v106 = vrcp.pop %v78
    %v107 = vrcp.pop %v79
    %v108 = vmul.f32 %v78, %v106
    %v109 = vmul.f32 %v79, %v107
    %v110 = vsub.f32 2.0, %v108
    %v111 = vsub.f32 2.0, %v109
    %v112 = vmul.f32 %v106, %v110
    %v113 = vmul.f32 %v107, %v111
    %vm114 = vcmp.ge.f32.partialorder %v66, 0.0
    %vm115 = vcmp.ge.f32.partialorder %v67, 0.0
    %v116 = vmul.f32 %v75, %v112
    %v117 = vmul.f32 %v77, %v113
    %v118 = vsel %vm114, %v112, %v116
    %v119 = vsel %vm115, %v113, %v117
    %v120 = vadd.f32 %v118, %v68
    %v121 = vadd.f32 %v119, %v69
    %v122 = vmul.f32 %v118, 2.0
    %v123 = vmul.f32 %v119, 2.0
    %v124 = vmul.f32 %v122, %v68
    %v125 = vmul.f32 %v123, %v69
    %v126 = vsub.f32 %v120, %v124
    %v127 = vsub.f32 %v121, %v125
    %v128 = vmul.f32 %v68, -0.5
    %v129 = vmul.f32 %v69, -0.5
    %v130 = vadd.f32 %v128, 0.75
    %v131 = vadd.f32 %v129, 0.75
    %v132 = vmul.f32 %v104, %v130
    %v133 = vmul.f32 %v105, %v131
    %v134 = vrsqrt.pop %v126
    %v135 = vmul.f32 %v126, %v134
    %vm136 = vcmp.eq.f32.partialorder %v126, inf
    %v137 = vsel %vm136, %v126, %v135
    %vm138 = vcmp.eq.f32.partialorder %v126, 0.0
    %v139 = vand.u32 %v126, 2147483648
    %v140 = vsel %vm138, %v139, %v137
    %v141 = vrsqrt.pop %v127
    %v142 = vmul.f32 %v127, %v141
    %vm143 = vcmp.eq.f32.partialorder %v127, inf
    %v144 = vsel %vm143, %v127, %v142
    %vm145 = vcmp.eq.f32.partialorder %v127, 0.0
    %v146 = vand.u32 %v127, 2147483648
    %v147 = vsel %vm145, %v146, %v144
    %v148 = vmul.f32 %v140, %v126
    %v149 = vmul.f32 %v147, %v127
    %v150 = vmul.f32 %v132, %v148
    %v151 = vmul.f32 %v133, %v149
    %p152 = scmp.lt.s32.totalorder %s60, 1
    // Predicated region
    $region22: #{tpu_custom_call.1} parent=1 // pred_check
      %p153 = pneg %p152
    $region23: #{tpu_custom_call.1} parent=1 // pred_check_branch
      %155 = sbr.rel (%p153) target = $region25
    $region24: #{tpu_custom_call.1} parent=1 // pred_region
      %v156 = vld [vmem:[#allocation2] sm:$0xff]
      %v157 = vadd.f32 %v150, %v151
      %v158 = vadd.f32 %v156, %v157
      %159 = vst [vmem:[#allocation2] sm:$0xff] %v158
    $region25: #{tpu_custom_call.1} parent=1 // pred_fallthru
      _
    // Predicated region
    $region26: #{tpu_custom_call.1} parent=1 // pred_check
      %p160 = pneg %p61
    $region27: #{tpu_custom_call.1} parent=1 // pred_check_branch
      %162 = sbr.rel (%p160) target = $region29
    $region28: #{tpu_custom_call.1} parent=1 // pred_region
      %v163 = vld [vmem:[#allocation2] sm:$0xff]
      %164 = vst [vmem:[#allocation8] sm:$0xff] %v163
    $region29: #{tpu_custom_call.1} parent=1 // pred_fallthru
      _
    // Predicated region
    $region30: #{tpu_custom_call.1} parent=1 // pred_check
      _
    $region31: #{tpu_custom_call.1} parent=1 // pred_check_branch
      %166 = sbr.rel (0) target = $region33
    $region32: #{tpu_custom_call.1} parent=1 // pred_region
      %s168 = ssub.s32 128, 128
      %169 = vsyncadd [#allocation5], %s168
      %s171 = sshll.u32 [#allocation8], 4
      %s172 = int_to_ptr.vmem [resolvable:$true] %s171
      %174 = dma.vmem_to_hbm [thread:$0]  %s172, 128, %s2, [#allocation5]
    $region33: #{tpu_custom_call.1} parent=1 // pred_fallthru
      _
    // Predicated region
    $region34: #{tpu_custom_call.1} parent=1 // pred_check
      _
    $region35: #{tpu_custom_call.1} parent=1 // pred_check_branch
      %176 = sbr.rel (0) target = $region37
    $region36: #{tpu_custom_call.1} parent=1 // pred_region
      %177 = dma.done [#allocation5], 128
    $region37: #{tpu_custom_call.1} parent=1 // pred_fallthru
      _
    %178 = vsyncpa [#allocation4], 1
    %179 = vsyncpa [#allocation7], 1
    %180 = vsyncpa [#allocation5], 1

</llo_original>
